<compile_context>
chip_gen: v5e
topology: v5e:2x2
jax: 0.10.0
libtpu: 0.0.40
codegen_flags: <defaults>
</compile_context>

<pallas_src>
import jax
import jax.numpy as jnp
import numpy as np
from jax import lax
from jax.experimental import pallas as pl
from jax.experimental.pallas import tpu as pltpu

STATE_CHANNELS = 8
ACTIONS_SIZE = 4
ACTIONS_PAD = 8                      # sublane-pad the per-action table / one-hot width
HEIGHT = 4
WIDTH = 4
HW = HEIGHT * WIDTH
NUM_RES_BLOCKS = 2
FEAT = STATE_CHANNELS * HW           # 128 -> lane-dense feature vector
N_LAYERS = 2 + 2 * NUM_RES_BLOCKS    # 6 conv+BN stages
BIAS_ROWS = 8                        # 6 BN-shift rows padded to sublane 8
BN_EPS = 1e-5


# ---------------------------------------------------------------------------
# Fused kernel: whole dynamics net for one batch tile.
#   x_ref      : (TB, 128) bf16   CHW-flat state
#   act_ref    : (TB, 1)   int32  action ids
#   w_ref      : (6, 128, 128) bf16  BN-scale-folded dense weights (VMEM-resident)
#   atable_ref : (8, 128)  f32    per-action conv1 response (rows 4..7 zero)
#   bias_ref   : (8, 128)  f32    per-layer BN shifts (rows 0..5 used)
#   o_ref      : (TB, 128) f32    output state, lane-dense
# ---------------------------------------------------------------------------
def fused_dynamics_kernel(x_ref, act_ref, w_ref, atable_ref, bias_ref, o_ref):
    tb = x_ref.shape[0]

    # In-kernel one-hot of the action id; out-of-range ids -> all-zero row, matching
    # the reference one_hot. A tiny f32 dot gathers the per-action conv1 response.
    lane_ids = lax.broadcasted_iota(jnp.int32, (tb, ACTIONS_PAD), 1)
    onehot = (act_ref[...] == lane_ids).astype(jnp.float32)
    act_bias = jnp.dot(onehot, atable_ref[...], preferred_element_type=jnp.float32)

    def layer(a, idx, extra):
        # bf16 MXU matmul, f32 accumulation, f32 bias/skip/ReLU epilogue.
        y = jnp.dot(a.astype(jnp.bfloat16), w_ref[idx],
                    preferred_element_type=jnp.float32)
        return jnp.maximum(y + extra, 0.0)

    y = layer(x_ref[...], 0, act_bias + bias_ref[0:1, :])            # conv1+bn1+relu
    y = layer(y, 1, bias_ref[1:2, :])                                # conv2+bn2+relu
    for r in range(NUM_RES_BLOCKS):                                  # residual blocks
        h = layer(y, 2 + 2 * r, bias_ref[2 + 2 * r:3 + 2 * r, :])
        y = layer(h, 3 + 2 * r, bias_ref[3 + 2 * r:4 + 2 * r, :] + y)

    o_ref[...] = y.astype(o_ref.dtype)


def _choose_tile_b(b8):
    """Batch tile: multiple of 8, <=2048 rows, >=2 grid steps once the batch is big
    enough (engages both v7x TensorCores), avoids near-empty padding tiles."""
    if b8 <= 256:
        return b8
    half = (((b8 + 1) // 2) + 7) // 8 * 8
    return min(2048, half)


def fused_forward(prep, x_flat, act):
    """x_flat: (B,128) bf16 CHW-flat; act: (B,1) int32. Returns (B,128) f32."""
    B = x_flat.shape[0]
    b8 = ((B + 7) // 8) * 8
    tile_b = _choose_tile_b(b8)
    n_tiles = (b8 + tile_b - 1) // tile_b
    b_pad = n_tiles * tile_b
    if b_pad != B:
        x_flat = jnp.pad(x_flat, ((0, b_pad - B), (0, 0)))
        act = jnp.pad(act, ((0, b_pad - B), (0, 0)), constant_values=-1)

    out = pl.pallas_call(
        fused_dynamics_kernel,
        grid=(n_tiles,),
        in_specs=[
            pl.BlockSpec((tile_b, FEAT), lambda i: (i, 0)),             # x (bf16)
            pl.BlockSpec((tile_b, 1), lambda i: (i, 0)),                # action ids
            # Constant block index -> VMEM-resident across the whole grid.
            # TODO(synk): pipeline_mode=pl.Buffered(1) would drop the unused second
            # weight buffer (~192 KiB bf16); left at default for compile safety.
            pl.BlockSpec((N_LAYERS, FEAT, FEAT), lambda i: (0, 0, 0)),  # weights bf16
            pl.BlockSpec((ACTIONS_PAD, FEAT), lambda i: (0, 0)),        # action table
            pl.BlockSpec((BIAS_ROWS, FEAT), lambda i: (0, 0)),          # BN shifts
        ],
        out_specs=pl.BlockSpec((tile_b, FEAT), lambda i: (i, 0)),
        out_shape=jax.ShapeDtypeStruct((b_pad, FEAT), jnp.float32),
        compiler_params=pltpu.CompilerParams(
            dimension_semantics=("parallel",),
            vmem_limit_bytes=32 * 1024 * 1024,
        ),
    )(x_flat, act, prep["w_stack"], prep["atable"], prep["bias_stack"])
    return out[:B]


def dynamic_forward(prep, state_nchw, action):
    """state_nchw: (B, 8, 4, 4); action: scalar / (B,) / (B,1) int. Returns (B,8,4,4) f32."""
    B = state_nchw.shape[0]
    # CHW-flat features: a pure reshape (no NCHW<->NHWC transpose). The channel-major
    # permutation is folded into the dense weights / bias tables at init time.
    x = state_nchw.reshape(B, FEAT).astype(jnp.bfloat16)
    act = jnp.broadcast_to(jnp.asarray(action, jnp.int32).reshape(-1), (B,)).reshape(B, 1)
    out = fused_forward(prep, x, act)
    return out.reshape(B, STATE_CHANNELS, HEIGHT, WIDTH)


# ---------------------------------------------------------------------------
# Init-time lowering (host-side numpy): conv -> dense (CHW-flat), BN folding
# ---------------------------------------------------------------------------
def _dense_from_conv3x3(w4, scale):
    """3x3 pad-1 conv on the fixed 4x4 grid -> dense (Cin*HW, Cout*HW) in CHW-flat
    ordering, with the BN scale folded into the output columns."""
    w4 = np.asarray(w4, np.float32)
    scale = np.asarray(scale, np.float32)
    cin, cout = w4.shape[2], w4.shape[3]
    W = np.zeros((cin * HW, cout * HW), np.float32)
    ci_off = np.arange(cin) * HW
    co_off = np.arange(cout) * HW
    for ho in range(HEIGHT):
        for wo in range(WIDTH):
            cols = co_off + (ho * WIDTH + wo)
            for kh in range(3):
                for kw in range(3):
                    hi, wi = ho + kh - 1, wo + kw - 1
                    if 0 <= hi < HEIGHT and 0 <= wi < WIDTH:
                        rows = ci_off + (hi * WIDTH + wi)
                        W[np.ix_(rows, cols)] += w4[kh, kw] * scale[None, :]
    return W


def _dense_from_conv1x1(w4, scale):
    """1x1 conv -> dense (Cin*HW, Cout*HW) in CHW-flat ordering, BN scale folded."""
    w4 = np.asarray(w4, np.float32)
    scale = np.asarray(scale, np.float32)
    cin, cout = w4.shape[2], w4.shape[3]
    W = np.zeros((cin * HW, cout * HW), np.float32)
    blk = w4[0, 0] * scale[None, :]
    ci_off = np.arange(cin) * HW
    co_off = np.arange(cout) * HW
    for p in range(HW):
        W[np.ix_(ci_off + p, co_off + p)] = blk
    return W


def _action_response(w4, scale):
    """Per-action conv1 response to the (spatially constant, zero-padded) one-hot
    action plane, BN-scaled, in CHW-flat ordering. Shape (ACTIONS_PAD, 128)."""
    w4 = np.asarray(w4, np.float32)
    scale = np.asarray(scale, np.float32)
    cout = w4.shape[3]
    co_off = np.arange(cout) * HW
    table = np.zeros((ACTIONS_PAD, FEAT), np.float32)
    for a in range(ACTIONS_SIZE):
        for ho in range(HEIGHT):
            for wo in range(WIDTH):
                acc = np.zeros((cout,), np.float32)
                for kh in range(3):
                    for kw in range(3):
                        hi, wi = ho + kh - 1, wo + kw - 1
                        if 0 <= hi < HEIGHT and 0 <= wi < WIDTH:
                            acc += w4[kh, kw, STATE_CHANNELS + a]
                table[a, co_off + (ho * WIDTH + wo)] = acc * scale
    return table


def prepare_params(params):
    p1 = params["conv1"]
    w1 = _dense_from_conv3x3(np.asarray(p1["w4"])[:, :, :STATE_CHANNELS, :], p1["scale"])
    atable = _action_response(p1["w4"], p1["scale"])

    p2 = params["conv2"]
    w2 = _dense_from_conv1x1(p2["w4"], p2["scale"])

    w_list = [w1, w2]
    shift_list = [np.repeat(np.asarray(p1["shift"], np.float32), HW),
                  np.repeat(np.asarray(p2["shift"], np.float32), HW)]
    for blk in params["res"]:
        for c in ("c1", "c2"):
            pc = blk[c]
            w_list.append(_dense_from_conv3x3(pc["w4"], pc["scale"]))
            shift_list.append(np.repeat(np.asarray(pc["shift"], np.float32), HW))

    w_stack = np.stack(w_list, axis=0)                        # (6, 128, 128)
    bias_stack = np.zeros((BIAS_ROWS, FEAT), np.float32)      # pad rows to sublane-8
    bias_stack[:len(shift_list)] = np.stack(shift_list, axis=0)

    return {
        "w_stack": jnp.asarray(w_stack, jnp.bfloat16),        # bf16: native MXU dtype
        "atable": jnp.asarray(atable),                        # f32 epilogue operands
        "bias_stack": jnp.asarray(bias_stack),
    }


# ---------------------------------------------------------------------------
# Raw parameter init (conv weights + eval-mode BatchNorm folded to scale/shift)
# ---------------------------------------------------------------------------
def init_conv_bn(key, kh, kw, cin, cout):
    k1, k2, k3, k4, k5, k6 = jax.random.split(key, 6)
    w4 = jax.random.normal(k1, (kh, kw, cin, cout), jnp.float32) / np.sqrt(kh * kw * cin)
    bias = 0.1 * jax.random.normal(k2, (cout,), jnp.float32)
    gamma = 1.0 + 0.1 * jax.random.normal(k3, (cout,), jnp.float32)
    beta = 0.1 * jax.random.normal(k4, (cout,), jnp.float32)
    r_mean = 0.1 * jax.random.normal(k5, (cout,), jnp.float32)
    r_var = 1.0 + 0.5 * jax.random.uniform(k6, (cout,), jnp.float32)
    scale = gamma / jnp.sqrt(r_var + BN_EPS)
    shift = beta - r_mean * scale + scale * bias
    return {"w4": w4, "scale": scale, "shift": shift}


def init_params(key):
    ks = jax.random.split(key, 6)
    # TODO(synk): resBlock is not defined in the provided snippet; a standard MuZero
    # residual block (conv3x3-bn-relu-conv3x3-bn + skip, relu) is assumed.
    return {
        "conv1": init_conv_bn(ks[0], 3, 3, STATE_CHANNELS + ACTIONS_SIZE, STATE_CHANNELS),
        "conv2": init_conv_bn(ks[1], 1, 1, STATE_CHANNELS, STATE_CHANNELS),
        "res": [
            {
                "c1": init_conv_bn(ks[2 + 2 * i], 3, 3, STATE_CHANNELS, STATE_CHANNELS),
                "c2": init_conv_bn(ks[3 + 2 * i], 3, 3, STATE_CHANNELS, STATE_CHANNELS),
            }
            for i in range(NUM_RES_BLOCKS)
        ],
    }


# ---------------------------------------------------------------------------
# Pure-JAX f32 reference (lax.conv) for correctness checking
# ---------------------------------------------------------------------------
def _ref_conv(x, w4, scale, shift, skip=None, relu=True):
    y = lax.conv_general_dilated(
        x, w4, window_strides=(1, 1), padding="SAME",
        dimension_numbers=("NHWC", "HWIO", "NHWC"))
    y = y * scale + shift
    if skip is not None:
        y = y + skip
    if relu:
        y = jnp.maximum(y, 0.0)
    return y


def reference_forward(params, state_nchw, action):
    state = jnp.transpose(state_nchw, (0, 2, 3, 1))
    B, H, W, C = state.shape
    a_onehot = jax.nn.one_hot(action, ACTIONS_SIZE, dtype=state.dtype)
    action_plane = jnp.broadcast_to(a_onehot[:, None, None, :], (B, H, W, ACTIONS_SIZE))
    x = jnp.concatenate([state, action_plane], axis=-1)
    p = params["conv1"]
    y = _ref_conv(x, p["w4"], p["scale"], p["shift"])
    p = params["conv2"]
    y = _ref_conv(y, p["w4"], p["scale"], p["shift"])
    for blk in params["res"]:
        p1, p2 = blk["c1"], blk["c2"]
        h = _ref_conv(y, p1["w4"], p1["scale"], p1["shift"])
        y = _ref_conv(h, p2["w4"], p2["scale"], p2["shift"], skip=y)
    return jnp.transpose(y, (0, 3, 1, 2))


if __name__ == "__main__":
    key = jax.random.PRNGKey(0)
    k_param, k_state = jax.random.split(key)

    params = init_params(k_param)
    prep = prepare_params(params)

    state = jax.random.normal(k_state, (2, STATE_CHANNELS, HEIGHT, WIDTH), jnp.float32)
    action = jnp.array([1, 3], dtype=jnp.int32)

    out = jax.block_until_ready(dynamic_forward(prep, state, action))
    ref = jax.block_until_ready(reference_forward(params, state, action))

    assert out.shape == (2, STATE_CHANNELS, HEIGHT, WIDTH), out.shape
    # bf16 weights/activations (perf review) vs the f32 lax.conv reference: f32
    # accumulation + f32 epilogue are kept, tolerance loosened accordingly.
    np.testing.assert_allclose(np.asarray(out), np.asarray(ref), rtol=5e-2, atol=5e-2)
    print("KERNEL_OK")
</pallas_src>

<mosaic_0001>
module attributes {stable_mosaic.version = 11 : i64} {
  func.func @fused_dynamics_kernel(%arg0: i32, %arg1: memref<8x128xbf16, #tpu.memory_space<vmem>>, %arg2: memref<8x1xi32, #tpu.memory_space<vmem>>, %arg3: memref<6x128x128xbf16, #tpu.memory_space<vmem>>, %arg4: memref<8x128xf32, #tpu.memory_space<vmem>>, %arg5: memref<8x128xf32, #tpu.memory_space<vmem>>, %arg6: memref<8x128xf32, #tpu.memory_space<vmem>>) attributes {dimension_semantics = [#tpu.dimension_semantics<parallel>], iteration_bounds = array<i64: 1>, scalar_prefetch = 0 : i64, scratch_operands = 0 : i64, tpu.core_type = #tpu.core_type<tc>, window_params = [{transform_indices = @transform_0, window_bounds = array<i64: 8, 128>}, {transform_indices = @transform_1, window_bounds = array<i64: 8, 1>}, {pipeline_mode = #tpu.pipeline_mode<synchronous>, transform_indices = @transform_2, window_bounds = array<i64: 6, 128, 128>}, {pipeline_mode = #tpu.pipeline_mode<synchronous>, transform_indices = @transform_3, window_bounds = array<i64: 8, 128>}, {pipeline_mode = #tpu.pipeline_mode<synchronous>, transform_indices = @transform_4, window_bounds = array<i64: 8, 128>}, {transform_indices = @transform_5, window_bounds = array<i64: 8, 128>}]} {
    %0 = tpu.iota {dimensions = array<i32: 1>} : vector<8x8xi32>
    %c0 = arith.constant 0 : index
    %c0_0 = arith.constant 0 : index
    %1 = vector.load %arg2[%c0, %c0_0] : memref<8x1xi32, #tpu.memory_space<vmem>>, vector<8x1xi32>
    %2 = vector.broadcast %1 : vector<8x1xi32> to vector<8x8xi32>
    %3 = arith.cmpi eq, %2, %0 : vector<8x8xi32>
    %4 = arith.extui %3 : vector<8x8xi1> to vector<8x8xi32>
    %5 = arith.sitofp %4 : vector<8x8xi32> to vector<8x8xf32>
    %c0_1 = arith.constant 0 : index
    %c0_2 = arith.constant 0 : index
    %6 = vector.load %arg4[%c0_1, %c0_2] : memref<8x128xf32, #tpu.memory_space<vmem>>, vector<8x128xf32>
    %cst = arith.constant dense<0.000000e+00> : vector<8x128xf32>
    %7 = tpu.matmul %5, %6, %cst {dimension_numbers = #tpu.dot_dimension_numbers<[1], [0], [0], [1], [0, 0, 1, 1], [], []>} : vector<8x8xf32>, vector<8x128xf32>, vector<8x128xf32> -> vector<8x128xf32>
    %c0_3 = arith.constant 0 : index
    %c0_4 = arith.constant 0 : index
    %8 = vector.load %arg1[%c0_3, %c0_4] : memref<8x128xbf16, #tpu.memory_space<vmem>>, vector<8x128xbf16>
    %c0_5 = arith.constant 0 : index
    %c0_6 = arith.constant 0 : index
    %9 = vector.load %arg5[%c0_5, %c0_6] : memref<8x128xf32, #tpu.memory_space<vmem>>, vector<1x128xf32>
    %10 = vector.broadcast %9 : vector<1x128xf32> to vector<8x128xf32>
    %11 = arith.addf %7, %10 : vector<8x128xf32>
    %c0_7 = arith.constant 0 : index
    %c0_8 = arith.constant 0 : index
    %c0_9 = arith.constant 0 : index
    %12 = vector.load %arg3[%c0_7, %c0_8, %c0_9] : memref<6x128x128xbf16, #tpu.memory_space<vmem>>, vector<1x128x128xbf16>
    %13 = vector.shape_cast %12 : vector<1x128x128xbf16> to vector<128x128xbf16>
    %cst_10 = arith.constant dense<0.000000e+00> : vector<8x128xf32>
    %14 = tpu.matmul %8, %13, %cst_10 {dimension_numbers = #tpu.dot_dimension_numbers<[1], [0], [0], [1], [0, 0, 1, 1], [], []>} : vector<8x128xbf16>, vector<128x128xbf16>, vector<8x128xf32> -> vector<8x128xf32>
    %15 = arith.addf %14, %11 : vector<8x128xf32>
    %cst_11 = arith.constant 0.000000e+00 : f32
    %16 = vector.broadcast %cst_11 : f32 to vector<8x128xf32>
    %17 = arith.maximumf %15, %16 : vector<8x128xf32>
    %c1 = arith.constant 1 : index
    %c0_12 = arith.constant 0 : index
    %18 = vector.load %arg5[%c1, %c0_12] : memref<8x128xf32, #tpu.memory_space<vmem>>, vector<1x128xf32>
    %19 = arith.truncf %17 : vector<8x128xf32> to vector<8x128xbf16>
    %c1_13 = arith.constant 1 : index
    %c0_14 = arith.constant 0 : index
    %c0_15 = arith.constant 0 : index
    %20 = vector.load %arg3[%c1_13, %c0_14, %c0_15] : memref<6x128x128xbf16, #tpu.memory_space<vmem>>, vector<1x128x128xbf16>
    %21 = vector.shape_cast %20 : vector<1x128x128xbf16> to vector<128x128xbf16>
    %cst_16 = arith.constant dense<0.000000e+00> : vector<8x128xf32>
    %22 = tpu.matmul %19, %21, %cst_16 {dimension_numbers = #tpu.dot_dimension_numbers<[1], [0], [0], [1], [0, 0, 1, 1], [], []>} : vector<8x128xbf16>, vector<128x128xbf16>, vector<8x128xf32> -> vector<8x128xf32>
    %23 = vector.broadcast %18 : vector<1x128xf32> to vector<8x128xf32>
    %24 = arith.addf %22, %23 : vector<8x128xf32>
    %cst_17 = arith.constant 0.000000e+00 : f32
    %25 = vector.broadcast %cst_17 : f32 to vector<8x128xf32>
    %26 = arith.maximumf %24, %25 : vector<8x128xf32>
    %c2 = arith.constant 2 : index
    %c0_18 = arith.constant 0 : index
    %27 = vector.load %arg5[%c2, %c0_18] : memref<8x128xf32, #tpu.memory_space<vmem>>, vector<1x128xf32>
    %28 = arith.truncf %26 : vector<8x128xf32> to vector<8x128xbf16>
    %c2_19 = arith.constant 2 : index
    %c0_20 = arith.constant 0 : index
    %c0_21 = arith.constant 0 : index
    %29 = vector.load %arg3[%c2_19, %c0_20, %c0_21] : memref<6x128x128xbf16, #tpu.memory_space<vmem>>, vector<1x128x128xbf16>
    %30 = vector.shape_cast %29 : vector<1x128x128xbf16> to vector<128x128xbf16>
    %cst_22 = arith.constant dense<0.000000e+00> : vector<8x128xf32>
    %31 = tpu.matmul %28, %30, %cst_22 {dimension_numbers = #tpu.dot_dimension_numbers<[1], [0], [0], [1], [0, 0, 1, 1], [], []>} : vector<8x128xbf16>, vector<128x128xbf16>, vector<8x128xf32> -> vector<8x128xf32>
    %32 = vector.broadcast %27 : vector<1x128xf32> to vector<8x128xf32>
    %33 = arith.addf %31, %32 : vector<8x128xf32>
    %cst_23 = arith.constant 0.000000e+00 : f32
    %34 = vector.broadcast %cst_23 : f32 to vector<8x128xf32>
    %35 = arith.maximumf %33, %34 : vector<8x128xf32>
    %c3 = arith.constant 3 : index
    %c0_24 = arith.constant 0 : index
    %36 = vector.load %arg5[%c3, %c0_24] : memref<8x128xf32, #tpu.memory_space<vmem>>, vector<1x128xf32>
    %37 = vector.broadcast %36 : vector<1x128xf32> to vector<8x128xf32>
    %38 = arith.addf %37, %26 : vector<8x128xf32>
    %39 = arith.truncf %35 : vector<8x128xf32> to vector<8x128xbf16>
    %c3_25 = arith.constant 3 : index
    %c0_26 = arith.constant 0 : index
    %c0_27 = arith.constant 0 : index
    %40 = vector.load %arg3[%c3_25, %c0_26, %c0_27] : memref<6x128x128xbf16, #tpu.memory_space<vmem>>, vector<1x128x128xbf16>
    %41 = vector.shape_cast %40 : vector<1x128x128xbf16> to vector<128x128xbf16>
    %cst_28 = arith.constant dense<0.000000e+00> : vector<8x128xf32>
    %42 = tpu.matmul %39, %41, %cst_28 {dimension_numbers = #tpu.dot_dimension_numbers<[1], [0], [0], [1], [0, 0, 1, 1], [], []>} : vector<8x128xbf16>, vector<128x128xbf16>, vector<8x128xf32> -> vector<8x128xf32>
    %43 = arith.addf %42, %38 : vector<8x128xf32>
    %cst_29 = arith.constant 0.000000e+00 : f32
    %44 = vector.broadcast %cst_29 : f32 to vector<8x128xf32>
    %45 = arith.maximumf %43, %44 : vector<8x128xf32>
    %c4 = arith.constant 4 : index
    %c0_30 = arith.constant 0 : index
    %46 = vector.load %arg5[%c4, %c0_30] : memref<8x128xf32, #tpu.memory_space<vmem>>, vector<1x128xf32>
    %47 = arith.truncf %45 : vector<8x128xf32> to vector<8x128xbf16>
    %c4_31 = arith.constant 4 : index
    %c0_32 = arith.constant 0 : index
    %c0_33 = arith.constant 0 : index
    %48 = vector.load %arg3[%c4_31, %c0_32, %c0_33] : memref<6x128x128xbf16, #tpu.memory_space<vmem>>, vector<1x128x128xbf16>
    %49 = vector.shape_cast %48 : vector<1x128x128xbf16> to vector<128x128xbf16>
    %cst_34 = arith.constant dense<0.000000e+00> : vector<8x128xf32>
    %50 = tpu.matmul %47, %49, %cst_34 {dimension_numbers = #tpu.dot_dimension_numbers<[1], [0], [0], [1], [0, 0, 1, 1], [], []>} : vector<8x128xbf16>, vector<128x128xbf16>, vector<8x128xf32> -> vector<8x128xf32>
    %51 = vector.broadcast %46 : vector<1x128xf32> to vector<8x128xf32>
    %52 = arith.addf %50, %51 : vector<8x128xf32>
    %cst_35 = arith.constant 0.000000e+00 : f32
    %53 = vector.broadcast %cst_35 : f32 to vector<8x128xf32>
    %54 = arith.maximumf %52, %53 : vector<8x128xf32>
    %c5 = arith.constant 5 : index
    %c0_36 = arith.constant 0 : index
    %55 = vector.load %arg5[%c5, %c0_36] : memref<8x128xf32, #tpu.memory_space<vmem>>, vector<1x128xf32>
    %56 = vector.broadcast %55 : vector<1x128xf32> to vector<8x128xf32>
    %57 = arith.addf %56, %45 : vector<8x128xf32>
    %58 = arith.truncf %54 : vector<8x128xf32> to vector<8x128xbf16>
    %c5_37 = arith.constant 5 : index
    %c0_38 = arith.constant 0 : index
    %c0_39 = arith.constant 0 : index
    %59 = vector.load %arg3[%c5_37, %c0_38, %c0_39] : memref<6x128x128xbf16, #tpu.memory_space<vmem>>, vector<1x128x128xbf16>
    %60 = vector.shape_cast %59 : vector<1x128x128xbf16> to vector<128x128xbf16>
    %cst_40 = arith.constant dense<0.000000e+00> : vector<8x128xf32>
    %61 = tpu.matmul %58, %60, %cst_40 {dimension_numbers = #tpu.dot_dimension_numbers<[1], [0], [0], [1], [0, 0, 1, 1], [], []>} : vector<8x128xbf16>, vector<128x128xbf16>, vector<8x128xf32> -> vector<8x128xf32>
    %62 = arith.addf %61, %57 : vector<8x128xf32>
    %cst_41 = arith.constant 0.000000e+00 : f32
    %63 = vector.broadcast %cst_41 : f32 to vector<8x128xf32>
    %64 = arith.maximumf %62, %63 : vector<8x128xf32>
    %c0_42 = arith.constant 0 : index
    %c0_43 = arith.constant 0 : index
    %65 = vector.load %arg6[%c0_42, %c0_43] : memref<8x128xf32, #tpu.memory_space<vmem>>, vector<8x128xf32>
    tpu.vector_store %arg6[%c0_42, %c0_43], %64 {strides = array<i32>} : memref<8x128xf32, #tpu.memory_space<vmem>>, vector<8x128xf32>,
    return
  }
  func.func @transform_0(%arg0: i32) -> (i32, i32) {
    %c0_i32 = arith.constant 0 : i32
    %c0_i32_0 = arith.constant 0 : i32
    return %arg0, %c0_i32 : i32, i32
  }
  func.func @transform_1(%arg0: i32) -> (i32, i32) {
    %c0_i32 = arith.constant 0 : i32
    %c0_i32_0 = arith.constant 0 : i32
    return %arg0, %c0_i32 : i32, i32
  }
  func.func @transform_2(%arg0: i32) -> (i32, i32, i32) {
    %c0_i32 = arith.constant 0 : i32
    %c0_i32_0 = arith.constant 0 : i32
    %c0_i32_1 = arith.constant 0 : i32
    %c0_i32_2 = arith.constant 0 : i32
    return %c0_i32, %c0_i32_0, %c0_i32_1 : i32, i32, i32
  }
  func.func @transform_3(%arg0: i32) -> (i32, i32) {
    %c0_i32 = arith.constant 0 : i32
    %c0_i32_0 = arith.constant 0 : i32
    %c0_i32_1 = arith.constant 0 : i32
    return %c0_i32, %c0_i32_0 : i32, i32
  }
  func.func @transform_4(%arg0: i32) -> (i32, i32) {
    %c0_i32 = arith.constant 0 : i32
    %c0_i32_0 = arith.constant 0 : i32
    %c0_i32_1 = arith.constant 0 : i32
    return %c0_i32, %c0_i32_0 : i32, i32
  }
  func.func @transform_5(%arg0: i32) -> (i32, i32) {
    %c0_i32 = arith.constant 0 : i32
    %c0_i32_0 = arith.constant 0 : i32
    return %arg0, %c0_i32 : i32, i32
  }
}

</mosaic_0001>

<llo_original>
// kernel: tpu_custom_call.1
$region0: #{tpu_custom_call.1}
  #allocation0 [shape = 'u32[]', space=smem, size = 0x4, offset = 0x4, fixed_abs, tag = 'smem constant byte address 0x4 - core index']
  #allocation1 [shape = 'u32[72,128]{1,0:T(1,128)}', space=vmem, size = 0x9000, scoped, tag = 'internal scratch']
  %s0 = inlined_call_operand.hbm [shape: bf16[8,128], index: 0, kind: input, shape index: {}]
  %s1 = inlined_call_operand.vmem [shape: s32[8,1], index: 1, kind: input, shape index: {}]
  %s2 = inlined_call_operand.hbm [shape: bf16[6,128,128], index: 2, kind: input, shape index: {}]
  %s3 = inlined_call_operand.vmem [shape: f32[8,128], index: 3, kind: input, shape index: {}]
  %s4 = inlined_call_operand.hbm [shape: f32[8,128], index: 4, kind: input, shape index: {}]
  %s5 = inlined_call_operand.hbm [shape: f32[8,128], index: 5, kind: output, shape index: {}]
  %s6 = sld [smem:[#allocation0]]
  $region42: #{tpu_custom_call.1} parent=0
    _
  %s8 = ssub.s32 1, %s6
  %s9 = scalar_select 0, %s8, %s6
  $region1: #{tpu_custom_call.1} parent=0
    #allocation2 [shape = 'u8[2048]{0}', space=vmem, size = 0x800, scoped, tag = 'input window, operand 0, single buffered']
    #allocation3 [shape = 's32[1]{0}', space=sflag, size = 0x4, scoped, tag = 'scoped memory for tpu_custom_call.1']
    #allocation4 [shape = 's32[1]{0}', space=sflag, size = 0x4, scoped, tag = 'scoped memory for tpu_custom_call.1']
    #allocation5 [shape = 'u8[196608]{0}', space=vmem, size = 0x30000, scoped, tag = 'input window, operand 2, single buffered']
    #allocation6 [shape = 's32[1]{0}', space=sflag, size = 0x4, scoped, tag = 'scoped memory for tpu_custom_call.1']
    #allocation7 [shape = 'u8[4096]{0}', space=vmem, size = 0x1000, scoped, tag = 'input window, operand 4, single buffered']
    #allocation8 [shape = 'u8[4096]{0}', space=vmem, size = 0x1000, scoped, tag = 'output window, operand 0, single buffered']
    %10 = vsyncpa [#allocation3], 0
    %11 = vsyncpa [#allocation6], 0
    %12 = vsyncpa [#allocation4], 0
    // Predicated region
    $region2: #{tpu_custom_call.1} parent=1 // pred_check
      _
    $region3: #{tpu_custom_call.1} parent=1 // pred_check_branch
      %14 = sbr.rel (0) target = $region5
    $region4: #{tpu_custom_call.1} parent=1 // pred_region
      %16 = vsyncadd [#allocation3], 0
      %s18 = sshll.u32 %s0, 4
      %s19 = int_to_ptr.hbm [resolvable:$true] %s18
      %s20 = sshll.u32 [#allocation2], 4
      %s21 = int_to_ptr.vmem [resolvable:$true] %s20
      %23 = dma.hbm_to_vmem [thread:$0]  %s19, 64, %s21, [#allocation3]
    $region5: #{tpu_custom_call.1} parent=1 // pred_fallthru
      _
    // Predicated region
    $region6: #{tpu_custom_call.1} parent=1 // pred_check
      _
    $region7: #{tpu_custom_call.1} parent=1 // pred_check_branch
      %25 = sbr.rel (0) target = $region9
    $region8: #{tpu_custom_call.1} parent=1 // pred_region
      _
    $region9: #{tpu_custom_call.1} parent=1 // pred_fallthru
      _
    // Predicated region
    $region10: #{tpu_custom_call.1} parent=1 // pred_check
      _
    $region11: #{tpu_custom_call.1} parent=1 // pred_check_branch
      %27 = sbr.rel (0) target = $region13
    $region12: #{tpu_custom_call.1} parent=1 // pred_region
      %29 = vsyncadd [#allocation6], 0
      %s30 = sshll.u32 %s2, 4
      %s31 = int_to_ptr.hbm [resolvable:$true] %s30
      %s32 = sshll.u32 [#allocation5], 4
      %s33 = int_to_ptr.vmem [resolvable:$true] %s32
      %38 = dma.hbm_to_vmem [thread:$0]  %s31, 6144, %s33, [#allocation6], 64, 64, 4
    $region13: #{tpu_custom_call.1} parent=1 // pred_fallthru
      _
    // Predicated region
    $region14: #{tpu_custom_call.1} parent=1 // pred_check
      _
    $region15: #{tpu_custom_call.1} parent=1 // pred_check_branch
      %40 = sbr.rel (0) target = $region17
    $region16: #{tpu_custom_call.1} parent=1 // pred_region
      _
    $region17: #{tpu_custom_call.1} parent=1 // pred_fallthru
      _
    // Predicated region
    $region18: #{tpu_custom_call.1} parent=1 // pred_check
      _
    $region19: #{tpu_custom_call.1} parent=1 // pred_check_branch
      %42 = sbr.rel (0) target = $region21
    $region20: #{tpu_custom_call.1} parent=1 // pred_region
      %44 = vsyncadd [#allocation6], 0
      %s46 = sshll.u32 %s4, 4
      %s47 = int_to_ptr.hbm [resolvable:$true] %s46
      %s48 = sshll.u32 [#allocation7], 4
      %s49 = int_to_ptr.vmem [resolvable:$true] %s48
      %51 = dma.hbm_to_vmem [thread:$0]  %s47, 128, %s49, [#allocation6]
    $region21: #{tpu_custom_call.1} parent=1 // pred_fallthru
      _
    // Predicated region
    $region22: #{tpu_custom_call.1} parent=1 // pred_check
      _
    $region23: #{tpu_custom_call.1} parent=1 // pred_check_branch
      %53 = sbr.rel (0) target = $region25
    $region24: #{tpu_custom_call.1} parent=1 // pred_region
      %55 = dma.done [#allocation3], 64
    $region25: #{tpu_custom_call.1} parent=1 // pred_fallthru
      _
    // Predicated region
    $region26: #{tpu_custom_call.1} parent=1 // pred_check
      _
    $region27: #{tpu_custom_call.1} parent=1 // pred_check_branch
      %57 = sbr.rel (0) target = $region29
    $region28: #{tpu_custom_call.1} parent=1 // pred_region
      %59 = dma.done [#allocation6], 6144
    $region29: #{tpu_custom_call.1} parent=1 // pred_fallthru
      _
    // Predicated region
    $region30: #{tpu_custom_call.1} parent=1 // pred_check
      _
    $region31: #{tpu_custom_call.1} parent=1 // pred_check_branch
      %61 = sbr.rel (0) target = $region33
    $region32: #{tpu_custom_call.1} parent=1 // pred_region
      %63 = dma.done [#allocation6], 128
    $region33: #{tpu_custom_call.1} parent=1 // pred_fallthru
      _
    %v64 = vlaneseq
    %v65 = vand.u32 %v64, 127
    %v66 = vld [vmem:[%s1] sm:$0xff]
    %67 = vset.pattern.permute.xlu0 0
    %68 = vperm.xlu0 %67, %v66
    %v69 = vpop.permute.xlu0 %68
    %vm70 = vcmp.eq.s32.totalorder %v69, %v65
    %v71 = vsel %vm70, 1, 0
    %v72 = vcvt.s32.f32 %v71
    %v73 = vld [vmem:[%s3] sm:$0xff]
    %v74 = vld [vmem:[#allocation2] sm:$0xf]
    %v75 = vld [vmem:[#allocation7] sm:$0x1]
    %v76 = vperm.slane %v75, 0
    %vm77 = vcmask 64512
    %v79 = vsel %vm77, %v72, 0
    %81 = vmatpush.msra.mxu0 0.0
    %82 = vmatpush.msra.mxu0 0.0
    %83 = vmatpush.msra.mxu0 0.0
    %84 = vmatpush.msra.mxu0 0.0
    %85 = vmatpush.msra.mxu0 0.0
    %86 = vmatpush.msra.mxu0 0.0
    %87 = vmatpush.msra.mxu0 0.0
    %88 = vmatpush.msra.mxu0 0.0
    %89 = vmatpush.msra.mxu0 0.0
    %90 = vmatpush.msra.mxu0 0.0
    %91 = vmatpush.msra.mxu0 0.0
    %92 = vmatpush.msra.mxu0 0.0
    %93 = vmatpush.msra.mxu0 0.0
    %94 = vmatpush.msra.mxu0 0.0
    %95 = vmatpush.msra.mxu0 0.0
    %96 = vmatpush.msra.mxu0 %v73
    %97 = vmatmul.f32.gmra.mxu0 %v79
    %v98 = vpop.f32.mrf.mxu0
    %v99 = vadd.f32 %v76, %v98
    %100 = vdwg.mxu0
    %v101 = vld [vmem:[#allocation5] sm:$0xf]
    %v102 = vld [vmem:[#allocation5 + $0x4] sm:$0xf]
    %v103 = vld [vmem:[#allocation5 + $0x8] sm:$0xf]
    %v104 = vld [vmem:[#allocation5 + $0xc] sm:$0xf]
    %v105 = vld [vmem:[#allocation5 + $0x10] sm:$0xf]
    %v106 = vld [vmem:[#allocation5 + $0x14] sm:$0xf]
    %v107 = vld [vmem:[#allocation5 + $0x18] sm:$0xf]
    %v108 = vld [vmem:[#allocation5 + $0x1c] sm:$0xf]
    %v109 = vld [vmem:[#allocation5 + $0x20] sm:$0xf]
    %v110 = vld [vmem:[#allocation5 + $0x24] sm:$0xf]
    %v111 = vld [vmem:[#allocation5 + $0x28] sm:$0xf]
    %v112 = vld [vmem:[#allocation5 + $0x2c] sm:$0xf]
    %v113 = vld [vmem:[#allocation5 + $0x30] sm:$0xf]
    %v114 = vld [vmem:[#allocation5 + $0x34] sm:$0xf]
    %v115 = vld [vmem:[#allocation5 + $0x38] sm:$0xf]
    %v116 = vld [vmem:[#allocation5 + $0x3c] sm:$0xf]
    %v133 = vunpack.c.l.b16 %v101
    %v134 = vunpack.c.l.b16 %v102
    %v135 = vunpack.c.l.b16 %v103
    %v136 = vunpack.c.l.b16 %v104
    %v137 = vunpack.c.l.b16 %v105
    %v138 = vunpack.c.l.b16 %v106
    %v139 = vunpack.c.l.b16 %v107
    %v140 = vunpack.c.l.b16 %v108
    %v141 = vunpack.c.l.b16 %v109
    %v142 = vunpack.c.l.b16 %v110
    %v143 = vunpack.c.l.b16 %v111
    %v144 = vunpack.c.l.b16 %v112
    %v145 = vunpack.c.l.b16 %v113
    %v146 = vunpack.c.l.b16 %v114
    %v147 = vunpack.c.l.b16 %v115
    %v148 = vunpack.c.l.b16 %v116
    %v149 = vpack.c.b16 %v134, %v133
    %v150 = vpack.c.b16 %v136, %v135
    %v151 = vpack.c.b16 %v138, %v137
    %v152 = vpack.c.b16 %v140, %v139
    %v153 = vpack.c.b16 %v142, %v141
    %v154 = vpack.c.b16 %v144, %v143
    %v155 = vpack.c.b16 %v146, %v145
    %v156 = vpack.c.b16 %v148, %v147
    %165 = vmatpush.bf16.msra.mxu0 %v156
    %166 = vmatpush.bf16.msra.mxu0 %v155
    %167 = vmatpush.bf16.msra.mxu0 %v154
    %168 = vmatpush.bf16.msra.mxu0 %v153
    %169 = vmatpush.bf16.msra.mxu0 %v152
    %170 = vmatpush.bf16.msra.mxu0 %v151
    %171 = vmatpush.bf16.msra.mxu0 %v150
    %172 = vmatpush.bf16.msra.mxu0 %v149
    %173 = vmatmul.bf16.gmra.mxu0 %v74
    %v174 = vpop.f32.mrf.mxu0
    %v175 = vadd.f32 %v99, %v174
    %v176 = vpop.f32.mrf.mxu0
    %177 = vdwg.mxu0
    %v178 = vmax.f32 %v175, 0.0
    %v179 = vld [vmem:[#allocation7 + $0x1] sm:$0x1]
    %v180 = vpack.c.bf16 %v178, %v178
    %s181 = scalar_lea.vmem [#allocation5], 64
    %v182 = vld [vmem:[%s181] sm:$0xf]
    %v183 = vld [vmem:[%s181 + $0x4] sm:$0xf]
    %v184 = vld [vmem:[%s181 + $0x8] sm:$0xf]
    %v185 = vld [vmem:[%s181 + $0xc] sm:$0xf]
    %v186 = vld [vmem:[%s181 + $0x10] sm:$0xf]
    %v187 = vld [vmem:[%s181 + $0x14] sm:$0xf]
    %v188 = vld [vmem:[%s181 + $0x18] sm:$0xf]
    %v189 = vld [vmem:[%s181 + $0x1c] sm:$0xf]
    %v190 = vld [vmem:[%s181 + $0x20] sm:$0xf]
    %v191 = vld [vmem:[%s181 + $0x24] sm:$0xf]
    %v192 = vld [vmem:[%s181 + $0x28] sm:$0xf]
    %v193 = vld [vmem:[%s181 + $0x2c] sm:$0xf]
    %v194 = vld [vmem:[%s181 + $0x30] sm:$0xf]
    %v195 = vld [vmem:[%s181 + $0x34] sm:$0xf]
    %v196 = vld [vmem:[%s181 + $0x38] sm:$0xf]
    %v197 = vld [vmem:[%s181 + $0x3c] sm:$0xf]
    %v198 = vperm.slane %v179, 0
    %v215 = vunpack.c.l.b16 %v182
    %v216 = vunpack.c.l.b16 %v183
    %v217 = vunpack.c.l.b16 %v184
    %v218 = vunpack.c.l.b16 %v185
    %v219 = vunpack.c.l.b16 %v186
    %v220 = vunpack.c.l.b16 %v187
    %v221 = vunpack.c.l.b16 %v188
    %v222 = vunpack.c.l.b16 %v189
    %v223 = vunpack.c.l.b16 %v190
    %v224 = vunpack.c.l.b16 %v191
    %v225 = vunpack.c.l.b16 %v192
    %v226 = vunpack.c.l.b16 %v193
    %v227 = vunpack.c.l.b16 %v194
    %v228 = vunpack.c.l.b16 %v195
    %v229 = vunpack.c.l.b16 %v196
    %v230 = vunpack.c.l.b16 %v197
    %v231 = vpack.c.b16 %v216, %v215
    %v232 = vpack.c.b16 %v218, %v217
    %v233 = vpack.c.b16 %v220, %v219
    %v234 = vpack.c.b16 %v222, %v221
    %v235 = vpack.c.b16 %v224, %v223
    %v236 = vpack.c.b16 %v226, %v225
    %v237 = vpack.c.b16 %v228, %v227
    %v238 = vpack.c.b16 %v230, %v229
    %247 = vmatpush.bf16.msra.mxu0 %v238
    %248 = vmatpush.bf16.msra.mxu0 %v237
    %249 = vmatpush.bf16.msra.mxu0 %v236
    %250 = vmatpush.bf16.msra.mxu0 %v235
    %251 = vmatpush.bf16.msra.mxu0 %v234
    %252 = vmatpush.bf16.msra.mxu0 %v233
    %253 = vmatpush.bf16.msra.mxu0 %v232
    %254 = vmatpush.bf16.msra.mxu0 %v231
    %255 = vmatmul.bf16.gmra.mxu0 %v180
    %v256 = vpop.f32.mrf.mxu0
    %v257 = vadd.f32 %v198, %v256
    %v258 = vpop.f32.mrf.mxu0
    %259 = vdwg.mxu0
    %v260 = vmax.f32 %v257, 0.0
    %v261 = vld [vmem:[#allocation7 + $0x2] sm:$0x1]
    %v262 = vpack.c.bf16 %v260, %v260
    %s263 = scalar_lea.vmem [#allocation5], 128
    %v264 = vld [vmem:[%s263] sm:$0xf]
    %v265 = vld [vmem:[%s263 + $0x4] sm:$0xf]
    %v266 = vld [vmem:[%s263 + $0x8] sm:$0xf]
    %v267 = vld [vmem:[%s263 + $0xc] sm:$0xf]
    %v268 = vld [vmem:[%s263 + $0x10] sm:$0xf]
    %v269 = vld [vmem:[%s263 + $0x14] sm:$0xf]
    %v270 = vld [vmem:[%s263 + $0x18] sm:$0xf]
    %v271 = vld [vmem:[%s263 + $0x1c] sm:$0xf]
    %v272 = vld [vmem:[%s263 + $0x20] sm:$0xf]
    %v273 = vld [vmem:[%s263 + $0x24] sm:$0xf]
    %v274 = vld [vmem:[%s263 + $0x28] sm:$0xf]
    %v275 = vld [vmem:[%s263 + $0x2c] sm:$0xf]
    %v276 = vld [vmem:[%s263 + $0x30] sm:$0xf]
    %v277 = vld [vmem:[%s263 + $0x34] sm:$0xf]
    %v278 = vld [vmem:[%s263 + $0x38] sm:$0xf]
    %v279 = vld [vmem:[%s263 + $0x3c] sm:$0xf]
    %v280 = vperm.slane %v261, 0
    %v297 = vunpack.c.l.b16 %v264
    %v298 = vunpack.c.l.b16 %v265
    %v299 = vunpack.c.l.b16 %v266
    %v300 = vunpack.c.l.b16 %v267
    %v301 = vunpack.c.l.b16 %v268
    %v302 = vunpack.c.l.b16 %v269
    %v303 = vunpack.c.l.b16 %v270
    %v304 = vunpack.c.l.b16 %v271
    %v305 = vunpack.c.l.b16 %v272
    %v306 = vunpack.c.l.b16 %v273
    %v307 = vunpack.c.l.b16 %v274
    %v308 = vunpack.c.l.b16 %v275
    %v309 = vunpack.c.l.b16 %v276
    %v310 = vunpack.c.l.b16 %v277
    %v311 = vunpack.c.l.b16 %v278
    %v312 = vunpack.c.l.b16 %v279
    %v313 = vpack.c.b16 %v298, %v297
    %v314 = vpack.c.b16 %v300, %v299
    %v315 = vpack.c.b16 %v302, %v301
    %v316 = vpack.c.b16 %v304, %v303
    %v317 = vpack.c.b16 %v306, %v305
    %v318 = vpack.c.b16 %v308, %v307
    %v319 = vpack.c.b16 %v310, %v309
    %v320 = vpack.c.b16 %v312, %v311
    %329 = vmatpush.bf16.msra.mxu0 %v320
    %330 = vmatpush.bf16.msra.mxu0 %v319
    %331 = vmatpush.bf16.msra.mxu0 %v318
    %332 = vmatpush.bf16.msra.mxu0 %v317
    %333 = vmatpush.bf16.msra.mxu0 %v316
    %334 = vmatpush.bf16.msra.mxu0 %v315
    %335 = vmatpush.bf16.msra.mxu0 %v314
    %336 = vmatpush.bf16.msra.mxu0 %v313
    %337 = vmatmul.bf16.gmra.mxu0 %v262
    %v338 = vpop.f32.mrf.mxu0
    %v339 = vadd.f32 %v280, %v338
    %v340 = vpop.f32.mrf.mxu0
    %341 = vdwg.mxu0
    %v342 = vmax.f32 %v339, 0.0
    %v343 = vld [vmem:[#allocation7 + $0x3] sm:$0x1]
    %v344 = vperm.slane %v343, 0
    %v345 = vadd.f32 %v344, %v260
    %v346 = vpack.c.bf16 %v342, %v342
    %s347 = scalar_lea.vmem [#allocation5], 192
    %v348 = vld [vmem:[%s347] sm:$0xf]
    %v349 = vld [vmem:[%s347 + $0x4] sm:$0xf]
    %v350 = vld [vmem:[%s347 + $0x8] sm:$0xf]
    %v351 = vld [vmem:[%s347 + $0xc] sm:$0xf]
    %v352 = vld [vmem:[%s347 + $0x10] sm:$0xf]
    %v353 = vld [vmem:[%s347 + $0x14] sm:$0xf]
    %v354 = vld [vmem:[%s347 + $0x18] sm:$0xf]
    %v355 = vld [vmem:[%s347 + $0x1c] sm:$0xf]
    %v356 = vld [vmem:[%s347 + $0x20] sm:$0xf]
    %v357 = vld [vmem:[%s347 + $0x24] sm:$0xf]
    %v358 = vld [vmem:[%s347 + $0x28] sm:$0xf]
    %v359 = vld [vmem:[%s347 + $0x2c] sm:$0xf]
    %v360 = vld [vmem:[%s347 + $0x30] sm:$0xf]
    %v361 = vld [vmem:[%s347 + $0x34] sm:$0xf]
    %v362 = vld [vmem:[%s347 + $0x38] sm:$0xf]
    %v363 = vld [vmem:[%s347 + $0x3c] sm:$0xf]
    %v380 = vunpack.c.l.b16 %v348
    %v381 = vunpack.c.l.b16 %v349
    %v382 = vunpack.c.l.b16 %v350
    %v383 = vunpack.c.l.b16 %v351
    %v384 = vunpack.c.l.b16 %v352
    %v385 = vunpack.c.l.b16 %v353
    %v386 = vunpack.c.l.b16 %v354
    %v387 = vunpack.c.l.b16 %v355
    %v388 = vunpack.c.l.b16 %v356
    %v389 = vunpack.c.l.b16 %v357
    %v390 = vunpack.c.l.b16 %v358
    %v391 = vunpack.c.l.b16 %v359
    %v392 = vunpack.c.l.b16 %v360
    %v393 = vunpack.c.l.b16 %v361
    %v394 = vunpack.c.l.b16 %v362
    %v395 = vunpack.c.l.b16 %v363
    %v396 = vpack.c.b16 %v381, %v380
    %v397 = vpack.c.b16 %v383, %v382
    %v398 = vpack.c.b16 %v385, %v384
    %v399 = vpack.c.b16 %v387, %v386
    %v400 = vpack.c.b16 %v389, %v388
    %v401 = vpack.c.b16 %v391, %v390
    %v402 = vpack.c.b16 %v393, %v392
    %v403 = vpack.c.b16 %v395, %v394
    %412 = vmatpush.bf16.msra.mxu0 %v403
    %413 = vmatpush.bf16.msra.mxu0 %v402
    %414 = vmatpush.bf16.msra.mxu0 %v401
    %415 = vmatpush.bf16.msra.mxu0 %v400
    %416 = vmatpush.bf16.msra.mxu0 %v399
    %417 = vmatpush.bf16.msra.mxu0 %v398
    %418 = vmatpush.bf16.msra.mxu0 %v397
    %419 = vmatpush.bf16.msra.mxu0 %v396
    %420 = vmatmul.bf16.gmra.mxu0 %v346
    %v421 = vpop.f32.mrf.mxu0
    %v422 = vadd.f32 %v345, %v421
    %v423 = vpop.f32.mrf.mxu0
    %424 = vdwg.mxu0
    %v425 = vmax.f32 %v422, 0.0
    %v426 = vld [vmem:[#allocation7 + $0x4] sm:$0x1]
    %v427 = vpack.c.bf16 %v425, %v425
    %s428 = scalar_lea.vmem [#allocation5], 256
    %v429 = vld [vmem:[%s428] sm:$0xf]
    %v430 = vld [vmem:[%s428 + $0x4] sm:$0xf]
    %v431 = vld [vmem:[%s428 + $0x8] sm:$0xf]
    %v432 = vld [vmem:[%s428 + $0xc] sm:$0xf]
    %v433 = vld [vmem:[%s428 + $0x10] sm:$0xf]
    %v434 = vld [vmem:[%s428 + $0x14] sm:$0xf]
    %v435 = vld [vmem:[%s428 + $0x18] sm:$0xf]
    %v436 = vld [vmem:[%s428 + $0x1c] sm:$0xf]
    %v437 = vld [vmem:[%s428 + $0x20] sm:$0xf]
    %v438 = vld [vmem:[%s428 + $0x24] sm:$0xf]
    %v439 = vld [vmem:[%s428 + $0x28] sm:$0xf]
    %v440 = vld [vmem:[%s428 + $0x2c] sm:$0xf]
    %v441 = vld [vmem:[%s428 + $0x30] sm:$0xf]
    %v442 = vld [vmem:[%s428 + $0x34] sm:$0xf]
    %v443 = vld [vmem:[%s428 + $0x38] sm:$0xf]
    %v444 = vld [vmem:[%s428 + $0x3c] sm:$0xf]
    %v445 = vperm.slane %v426, 0
    %v462 = vunpack.c.l.b16 %v429
    %v463 = vunpack.c.l.b16 %v430
    %v464 = vunpack.c.l.b16 %v431
    %v465 = vunpack.c.l.b16 %v432
    %v466 = vunpack.c.l.b16 %v433
    %v467 = vunpack.c.l.b16 %v434
    %v468 = vunpack.c.l.b16 %v435
    %v469 = vunpack.c.l.b16 %v436
    %v470 = vunpack.c.l.b16 %v437
    %v471 = vunpack.c.l.b16 %v438
    %v472 = vunpack.c.l.b16 %v439
    %v473 = vunpack.c.l.b16 %v440
    %v474 = vunpack.c.l.b16 %v441
    %v475 = vunpack.c.l.b16 %v442
    %v476 = vunpack.c.l.b16 %v443
    %v477 = vunpack.c.l.b16 %v444
    %v478 = vpack.c.b16 %v463, %v462
    %v479 = vpack.c.b16 %v465, %v464
    %v480 = vpack.c.b16 %v467, %v466
    %v481 = vpack.c.b16 %v469, %v468
    %v482 = vpack.c.b16 %v471, %v470
    %v483 = vpack.c.b16 %v473, %v472
    %v484 = vpack.c.b16 %v475, %v474
    %v485 = vpack.c.b16 %v477, %v476
    %494 = vmatpush.bf16.msra.mxu0 %v485
    %495 = vmatpush.bf16.msra.mxu0 %v484
    %496 = vmatpush.bf16.msra.mxu0 %v483
    %497 = vmatpush.bf16.msra.mxu0 %v482
    %498 = vmatpush.bf16.msra.mxu0 %v481
    %499 = vmatpush.bf16.msra.mxu0 %v480
    %500 = vmatpush.bf16.msra.mxu0 %v479
    %501 = vmatpush.bf16.msra.mxu0 %v478
    %502 = vmatmul.bf16.gmra.mxu0 %v427
    %v503 = vpop.f32.mrf.mxu0
    %v504 = vadd.f32 %v445, %v503
    %v505 = vpop.f32.mrf.mxu0
    %506 = vdwg.mxu0
    %v507 = vmax.f32 %v504, 0.0
    %v508 = vld [vmem:[#allocation7 + $0x5] sm:$0x1]
    %v509 = vperm.slane %v508, 0
    %v510 = vadd.f32 %v509, %v425
    %v511 = vpack.c.bf16 %v507, %v507
    %s512 = scalar_lea.vmem [#allocation5], 320
    %v513 = vld [vmem:[%s512] sm:$0xf]
    %v514 = vld [vmem:[%s512 + $0x4] sm:$0xf]
    %v515 = vld [vmem:[%s512 + $0x8] sm:$0xf]
    %v516 = vld [vmem:[%s512 + $0xc] sm:$0xf]
    %v517 = vld [vmem:[%s512 + $0x10] sm:$0xf]
    %v518 = vld [vmem:[%s512 + $0x14] sm:$0xf]
    %v519 = vld [vmem:[%s512 + $0x18] sm:$0xf]
    %v520 = vld [vmem:[%s512 + $0x1c] sm:$0xf]
    %v521 = vld [vmem:[%s512 + $0x20] sm:$0xf]
    %v522 = vld [vmem:[%s512 + $0x24] sm:$0xf]
    %v523 = vld [vmem:[%s512 + $0x28] sm:$0xf]
    %v524 = vld [vmem:[%s512 + $0x2c] sm:$0xf]
    %v525 = vld [vmem:[%s512 + $0x30] sm:$0xf]
    %v526 = vld [vmem:[%s512 + $0x34] sm:$0xf]
    %v527 = vld [vmem:[%s512 + $0x38] sm:$0xf]
    %v528 = vld [vmem:[%s512 + $0x3c] sm:$0xf]
    %v545 = vunpack.c.l.b16 %v513
    %v546 = vunpack.c.l.b16 %v514
    %v547 = vunpack.c.l.b16 %v515
    %v548 = vunpack.c.l.b16 %v516
    %v549 = vunpack.c.l.b16 %v517
    %v550 = vunpack.c.l.b16 %v518
    %v551 = vunpack.c.l.b16 %v519
    %v552 = vunpack.c.l.b16 %v520
    %v553 = vunpack.c.l.b16 %v521
    %v554 = vunpack.c.l.b16 %v522
    %v555 = vunpack.c.l.b16 %v523
    %v556 = vunpack.c.l.b16 %v524
    %v557 = vunpack.c.l.b16 %v525
    %v558 = vunpack.c.l.b16 %v526
    %v559 = vunpack.c.l.b16 %v527
    %v560 = vunpack.c.l.b16 %v528
    %v561 = vpack.c.b16 %v546, %v545
    %v562 = vpack.c.b16 %v548, %v547
    %v563 = vpack.c.b16 %v550, %v549
    %v564 = vpack.c.b16 %v552, %v551
    %v565 = vpack.c.b16 %v554, %v553
    %v566 = vpack.c.b16 %v556, %v555
    %v567 = vpack.c.b16 %v558, %v557
    %v568 = vpack.c.b16 %v560, %v559
    %577 = vmatpush.bf16.msra.mxu0 %v568
    %578 = vmatpush.bf16.msra.mxu0 %v567
    %579 = vmatpush.bf16.msra.mxu0 %v566
    %580 = vmatpush.bf16.msra.mxu0 %v565
    %581 = vmatpush.bf16.msra.mxu0 %v564
    %582 = vmatpush.bf16.msra.mxu0 %v563
    %583 = vmatpush.bf16.msra.mxu0 %v562
    %584 = vmatpush.bf16.msra.mxu0 %v561
    %585 = vmatmul.bf16.gmra.mxu0 %v511
    %v586 = vpop.f32.mrf.mxu0
    %v587 = vadd.f32 %v510, %v586
    %v588 = vpop.f32.mrf.mxu0
    %589 = vdwg.mxu0
    %v590 = vmax.f32 %v587, 0.0
    %591 = vst [vmem:[#allocation8] sm:$0xff] %v590
    // Predicated region
    $region34: #{tpu_custom_call.1} parent=1 // pred_check
      _
    $region35: #{tpu_custom_call.1} parent=1 // pred_check_branch
      %593 = sbr.rel (0) target = $region37
    $region36: #{tpu_custom_call.1} parent=1 // pred_region
      %595 = vsyncadd [#allocation4], 0
      %s597 = sshll.u32 [#allocation8], 4
      %s598 = int_to_ptr.vmem [resolvable:$true] %s597
      %s599 = sshll.u32 %s5, 4
      %s600 = int_to_ptr.hbm [resolvable:$true] %s599
      %602 = dma.vmem_to_hbm [thread:$0]  %s598, 128, %s600, [#allocation4]
    $region37: #{tpu_custom_call.1} parent=1 // pred_fallthru
      _
    // Predicated region
    $region38: #{tpu_custom_call.1} parent=1 // pred_check
      _
    $region39: #{tpu_custom_call.1} parent=1 // pred_check_branch
      %604 = sbr.rel (0) target = $region41
    $region40: #{tpu_custom_call.1} parent=1 // pred_region
      %606 = dma.done [#allocation4], 128
    $region41: #{tpu_custom_call.1} parent=1 // pred_fallthru
      _
    %607 = vsyncpa [#allocation3], 1
    %608 = vsyncpa [#allocation6], 1
    %609 = vsyncpa [#allocation4], 1

</llo_original>
